<compile_context>
chip_gen: v6e
topology: v6e:2x2x1
jax: 0.10.0
libtpu: 0.0.40
codegen_flags: <defaults>
</compile_context>

<pallas_src>
import numpy as np
import jax
import jax.numpy as jnp
from jax.experimental import pallas as pl
from jax.experimental.pallas import tpu as pltpu


# ----------------------------- Pallas kernel -------------------------------
def _blurconv_kernel(x_ref, m_ref, b_ref, o_ref):
    # x_ref : (BN, Cin*L)        input tile, trailing dims flattened (lane-dense)
    # m_ref : (Cin*L, Cout*Lout) fused conv+pad+blur+stride2+even-pad matrix
    # b_ref : (1, Cout*Lout)     fused bias row (already in final layout)
    # o_ref : (BN, Cout*Lout)    output tile, trailing dims flattened
    y = jnp.dot(x_ref[...], m_ref[...], preferred_element_type=jnp.float32)
    o_ref[...] = (y + b_ref[...].astype(jnp.float32)).astype(o_ref.dtype)


# -------------------------- host-side matrix prep ---------------------------
def _blur_matrix(L1, L2, Lout):
    """S[s, t] = blur tap linking conv-output position s to final position t
    (stride 2, blur padding 1); columns >= L2 stay zero (pad-to-even)."""
    c = np.array([1.0, 4.0, 6.0, 4.0, 1.0], np.float32) / 16.0
    S = np.zeros((L1, Lout), np.float32)
    for t in range(L2):
        for j in range(5):
            src = 2 * t + j - 1
            if 0 <= src < L1:
                S[src, t] += c[j]
    return S


def _fused_operator(W, b, L, padding):
    """Fold conv zero-padding + K conv taps + blur/stride-2/pad-to-even into a
    single parameter-sized matrix M (Cin*L, Cout*Lout) and a bias row."""
    Cout, Cin, K = W.shape
    L1 = L + 2 * padding - K + 1          # stride-1 conv output length
    L2 = (L1 + 2 - 5) // 2 + 1            # blur (stride 2, pad 1) output length
    Lout = L2 + (L2 % 2)                  # padded to even length
    S = _blur_matrix(L1, L2, Lout)        # (L1, Lout)

    # Per-tap banded matrices with the conv zero-padding folded into the band:
    #   Sk[k, l, t] = S[l + padding - k, t] if the index is in range else 0.
    Sk = np.zeros((K, L, Lout), np.float32)
    for k in range(K):
        lo = max(0, k - padding)
        hi = min(L, L1 + k - padding)
        if lo < hi:
            Sk[k, lo:hi, :] = S[lo + padding - k: hi + padding - k, :]

    # M[(ci, l), (c, t)] = sum_k W[c, ci, k] * Sk[k, l, t]
    M = jnp.einsum('oik,klt->ilot', W.astype(jnp.float32), jnp.asarray(Sk))
    M = M.reshape(Cin * L, Cout * Lout)

    colsum = jnp.asarray(S.sum(axis=0))   # (Lout,) -- zero on the even-pad col
    bias = (b.astype(jnp.float32)[:, None] * colsum[None, :]).reshape(
        1, Cout * Lout)
    return M, bias, Lout


# ------------------------------- wrapper ------------------------------------
def blur_conv(inp, W, b, *, padding, batch_tile=None):
    """inp: (N, Cin, L) NCL.  W: (Cout, Cin, K).  b: (Cout,).  Returns NCL."""
    N, Cin, L = inp.shape
    Cout, _, K = W.shape

    M, bias, Lout = _fused_operator(W, b, L, padding)
    CinL, CoutL = Cin * L, Cout * Lout

    # Batch tile: big enough to amortise the ~0.35 us per-grid-step overhead,
    # small enough that (a) grid >= 2 so both v7x TensorCores get work and
    # (b) double-buffered tiles stay well inside the VMEM budget.
    if batch_tile is None:
        per_n_bytes = (CinL + CoutL) * inp.dtype.itemsize
        budget = 4 * 1024 * 1024
        bn = max(1, min(N // 2 if N >= 2 else 1, budget // max(per_n_bytes, 1)))
        while N % bn:
            bn -= 1
    else:
        bn = batch_tile
    assert N % bn == 0, "batch tile must divide batch"
    G = N // bn

    # Free, contiguous reshapes (no activation-sized transposes / copies).
    x_t = inp.reshape(G, bn, CinL)
    M = M.astype(inp.dtype)               # bf16 inputs -> bf16 MXU operands

    # Explicit VMEM budget: double-buffered activation tiles + resident params.
    tile_bytes = 2 * bn * (CinL + CoutL) * inp.dtype.itemsize
    param_bytes = 2 * (CinL * CoutL * M.dtype.itemsize + CoutL * 4)
    vmem_limit = int(min(max(4 * (tile_bytes + param_bytes), 4 << 20), 32 << 20))

    out = pl.pallas_call(
        _blurconv_kernel,
        out_shape=jax.ShapeDtypeStruct((G, bn, CoutL), inp.dtype),
        grid_spec=pltpu.PrefetchScalarGridSpec(
            num_scalar_prefetch=0,
            grid=(G,),
            in_specs=[
                pl.BlockSpec((None, bn, CinL), lambda g: (g, 0, 0)),
                pl.BlockSpec((CinL, CoutL), lambda g: (0, 0)),
                pl.BlockSpec((1, CoutL), lambda g: (0, 0)),
            ],
            out_specs=pl.BlockSpec((None, bn, CoutL), lambda g: (g, 0, 0)),
        ),
        compiler_params=pltpu.CompilerParams(
            dimension_semantics=("parallel",),
            vmem_limit_bytes=vmem_limit),
    )(x_t, M, bias)

    return out.reshape(N, Cout, Lout)


# --------------------------- pure-JAX reference ------------------------------
def blur_conv_reference(inp, W, b, *, padding):
    Cout = W.shape[0]
    x1 = jax.lax.conv_general_dilated(
        inp, W, window_strides=(1,), padding=[(padding, padding)],
        dimension_numbers=("NCH", "OIH", "NCH"))
    x1 = x1 + b[None, :, None]
    blur_w = jnp.broadcast_to(
        jnp.array([1.0, 4.0, 6.0, 4.0, 1.0], jnp.float32) / 16.0,
        (Cout, 1, 5))
    x2 = jax.lax.conv_general_dilated(
        x1, blur_w, window_strides=(2,), padding=[(1, 1)],
        dimension_numbers=("NCH", "OIH", "NCH"),
        feature_group_count=Cout)
    if x2.shape[2] % 2 == 1:
        x2 = jnp.concatenate(
            [x2, jnp.zeros((x2.shape[0], x2.shape[1], 1), x2.dtype)], axis=2)
    return x2


# --------------------------------- main --------------------------------------
if __name__ == "__main__":
    N, IN_CH, OUT_CH, L = 2, 4, 8, 16
    KSIZE, STRIDE, PAD = 3, 2, 1
    assert STRIDE == 2  # mirrors the module's assertion

    key = jax.random.PRNGKey(0)
    k_x, k_w, k_b = jax.random.split(key, 3)
    inp = jax.random.normal(k_x, (N, IN_CH, L), dtype=jnp.float32)
    # deterministic synthetic Conv1d parameters (shapes match nn.Conv1d)
    W = 0.1 * jax.random.normal(k_w, (OUT_CH, IN_CH, KSIZE), dtype=jnp.float32)
    b = 0.1 * jax.random.normal(k_b, (OUT_CH,), dtype=jnp.float32)

    out = blur_conv(inp, W, b, padding=PAD)
    out = jax.block_until_ready(out)

    ref = blur_conv_reference(inp, W, b, padding=PAD)
    assert out.shape == ref.shape, (out.shape, ref.shape)
    assert jnp.allclose(out, ref, atol=1e-4, rtol=1e-4), "mismatch vs reference"

    print("KERNEL_OK")
</pallas_src>

<mosaic_0001>
module attributes {stable_mosaic.version = 11 : i64} {
  func.func @_blurconv_kernel(%arg0: i32, %arg1: memref<1x1x64xf32, #tpu.memory_space<vmem>>, %arg2: memref<64x64xf32, #tpu.memory_space<vmem>>, %arg3: memref<1x64xf32, #tpu.memory_space<vmem>>, %arg4: memref<1x1x64xf32, #tpu.memory_space<vmem>>) attributes {dimension_semantics = [#tpu.dimension_semantics<parallel>], iteration_bounds = array<i64: 2>, scalar_prefetch = 0 : i64, scratch_operands = 0 : i64, tpu.core_type = #tpu.core_type<tc>, window_params = [{transform_indices = @transform_0, window_bounds = array<i64: 1, 1, 64>}, {pipeline_mode = #tpu.pipeline_mode<synchronous>, transform_indices = @transform_1, window_bounds = array<i64: 64, 64>}, {pipeline_mode = #tpu.pipeline_mode<synchronous>, transform_indices = @transform_2, window_bounds = array<i64: 1, 64>}, {transform_indices = @transform_3, window_bounds = array<i64: 1, 1, 64>}]} {
    %c0 = arith.constant 0 : index
    %c0_0 = arith.constant 0 : index
    %c0_1 = arith.constant 0 : index
    %0 = vector.load %arg1[%c0, %c0_0, %c0_1] : memref<1x1x64xf32, #tpu.memory_space<vmem>>, vector<1x1x64xf32>
    %1 = vector.shape_cast %0 : vector<1x1x64xf32> to vector<1x64xf32>
    %c0_2 = arith.constant 0 : index
    %c0_3 = arith.constant 0 : index
    %2 = vector.load %arg2[%c0_2, %c0_3] : memref<64x64xf32, #tpu.memory_space<vmem>>, vector<64x64xf32>
    %cst = arith.constant dense<0.000000e+00> : vector<1x64xf32>
    %3 = tpu.matmul %1, %2, %cst {dimension_numbers = #tpu.dot_dimension_numbers<[1], [0], [0], [1], [0, 0, 1, 1], [], []>} : vector<1x64xf32>, vector<64x64xf32>, vector<1x64xf32> -> vector<1x64xf32>
    %c0_4 = arith.constant 0 : index
    %c0_5 = arith.constant 0 : index
    %4 = vector.load %arg3[%c0_4, %c0_5] : memref<1x64xf32, #tpu.memory_space<vmem>>, vector<1x64xf32>
    %5 = arith.addf %3, %4 : vector<1x64xf32>
    %c0_6 = arith.constant 0 : index
    %c0_7 = arith.constant 0 : index
    %c0_8 = arith.constant 0 : index
    %6 = vector.load %arg4[%c0_6, %c0_7, %c0_8] : memref<1x1x64xf32, #tpu.memory_space<vmem>>, vector<1x1x64xf32>
    %7 = vector.shape_cast %6 : vector<1x1x64xf32> to vector<1x64xf32>
    %8 = vector.shape_cast %5 : vector<1x64xf32> to vector<1x1x64xf32>
    tpu.vector_store %arg4[%c0_6, %c0_7, %c0_8], %8 {strides = array<i32>} : memref<1x1x64xf32, #tpu.memory_space<vmem>>, vector<1x1x64xf32>,
    return
  }
  func.func @transform_0(%arg0: i32) -> (i32, i32, i32) {
    %c0_i32 = arith.constant 0 : i32
    %c0_i32_0 = arith.constant 0 : i32
    %c0_i32_1 = arith.constant 0 : i32
    return %arg0, %c0_i32, %c0_i32_0 : i32, i32, i32
  }
  func.func @transform_1(%arg0: i32) -> (i32, i32) {
    %c0_i32 = arith.constant 0 : i32
    %c0_i32_0 = arith.constant 0 : i32
    %c0_i32_1 = arith.constant 0 : i32
    return %c0_i32, %c0_i32_0 : i32, i32
  }
  func.func @transform_2(%arg0: i32) -> (i32, i32) {
    %c0_i32 = arith.constant 0 : i32
    %c0_i32_0 = arith.constant 0 : i32
    %c0_i32_1 = arith.constant 0 : i32
    return %c0_i32, %c0_i32_0 : i32, i32
  }
  func.func @transform_3(%arg0: i32) -> (i32, i32, i32) {
    %c0_i32 = arith.constant 0 : i32
    %c0_i32_0 = arith.constant 0 : i32
    %c0_i32_1 = arith.constant 0 : i32
    return %arg0, %c0_i32, %c0_i32_0 : i32, i32, i32
  }
}

</mosaic_0001>

<llo_original>
// kernel: tpu_custom_call.1
$region0: #{tpu_custom_call.1}
  #allocation0 [shape = 'u32[]', space=smem, size = 0x4, offset = 0x4, fixed_abs, tag = 'smem constant byte address 0x4 - core index']
  #allocation1 [shape = 'u32[144,128]{1,0:T(1,128)}', space=vmem, size = 0x12000, scoped, tag = 'internal scratch']
  %s0 = inlined_call_operand.hbm [shape: f32[2,1,64], index: 0, kind: input, shape index: {}]
  %s1 = inlined_call_operand.hbm [shape: f32[64,64], index: 1, kind: input, shape index: {}]
  %s2 = inlined_call_operand.vmem [shape: f32[1,64], index: 2, kind: input, shape index: {}]
  %s3 = inlined_call_operand.hbm [shape: f32[2,1,64], index: 3, kind: output, shape index: {}]
  %s4 = sld [smem:[#allocation0]]
  $region53: #{tpu_custom_call.1} parent=0
    _
  %s6 = ssub.s32 1, %s4
  %s7 = scalar_select 0, %s6, %s4
  $region1: #{tpu_custom_call.1} parent=0
    #allocation2 [shape = 'u8[1024]{0}', space=vmem, size = 0x400, scoped, tag = 'input window, operand 0']
    #allocation3 [shape = 's32[2]{0}', space=sflag, size = 0x8, scoped, tag = 'scoped memory for tpu_custom_call.1']
    #allocation4 [shape = 's32[2]{0}', space=sflag, size = 0x8, scoped, tag = 'scoped memory for tpu_custom_call.1']
    #allocation5 [shape = 'u8[32768]{0}', space=vmem, size = 0x8000, scoped, tag = 'input window, operand 1, single buffered']
    #allocation6 [shape = 's32[1]{0}', space=sflag, size = 0x4, scoped, tag = 'scoped memory for tpu_custom_call.1']
    #allocation7 [shape = 'u8[1024]{0}', space=vmem, size = 0x400, scoped, tag = 'output window, operand 0']
    %8 = vsyncpa [#allocation3], 0
    %s9 = scalar_lea.sflag [#allocation3], 1
    %10 = vsyncpa %s9, 0
    %11 = vsyncpa [#allocation6], 0
    %12 = vsyncpa [#allocation4], 0
    %s13 = scalar_lea.sflag [#allocation4], 1
    %14 = vsyncpa %s13, 0
    loop: start=0, step=1, limit=4
    $region2: #{tpu_custom_call.1} parent=1 // loop_pre_header
      _
    $region3: #{tpu_custom_call.1} parent=1 // loop_header
      %s16 = sphi 0, %s20
      %p17 = scmp.ge.s32.totalorder %s16, 4
      %s26 = sphi 0, %s28
      %s29 = sphi 0, %s26
      %s30 = sphi 0, %s29
      %s46 = sphi 0, %s30
      %s50 = sphi 0, %s50
      %s52 = sphi 0, %s50
      %s53 = sphi 0, %s52
      %s67 = sphi 0, %s53
      %s71 = sphi 0, %s71
      %s73 = sphi 0, %s71
      %s74 = sphi 0, %s73
      %s88 = sphi 0, %s74
      %s94 = sphi 0, %s96
      %s97 = sphi 0, %s94
      %s98 = sphi 0, %s97
      %s114 = sphi 0, %s98
    $region4: #{tpu_custom_call.1} parent=1 // loop_header_branch
      %19 = sbr.rel (%p17) target = $region8
    $region5: #{tpu_custom_call.1} parent=1 // loop_body
      %s21 = ssub.s32 %s16, 1
      %s22 = ssub.s32 %s16, 2
      %s23 = sadd.s32 %s16, 1
      %s24 = ssub.s32 %s16, %s23
      %p25 = scmp.eq.s32.totalorder %s24, 0
      %s27 = sadd.s32 %s26, 1
      %s28 = scalar_select %p25, %s26, %s27
      %p31 = pneg %p25
      %p32 = scmp.eq.s32.totalorder %s16, 1
      %p33 = por %p31, %p32
      %p34 = scmp.ne.s32.totalorder %s26, %s29
      %p35 = scmp.eq.s32.totalorder %s16, 0
      %p36 = por %p34, %p35
      %p37 = scmp.ne.s32.totalorder %s26, %s29
      %p38 = scmp.eq.s32.totalorder %s21, 1
      %p39 = por %p37, %p38
      %p40 = scmp.ne.s32.totalorder %s29, %s30
      %p41 = scmp.eq.s32.totalorder %s21, 0
      %p42 = por %p40, %p41
      %p43 = scmp.ne.s32.totalorder %s29, %s30
      %p44 = scmp.eq.s32.totalorder %s22, 1
      %p45 = por %p43, %p44
      %p47 = scmp.ne.s32.totalorder %s30, %s46
      %p48 = scmp.eq.s32.totalorder %s22, 0
      %p49 = por %p47, %p48
      %s51 = sadd.s32 %s50, 1
      %p54 = scmp.eq.s32.totalorder %s16, 1
      %p55 = scmp.ne.s32.totalorder %s50, %s52
      %p56 = scmp.eq.s32.totalorder %s16, 0
      %p57 = por %p55, %p56
      %p58 = scmp.ne.s32.totalorder %s50, %s52
      %p59 = scmp.eq.s32.totalorder %s21, 1
      %p60 = por %p58, %p59
      %p61 = scmp.ne.s32.totalorder %s52, %s53
      %p62 = scmp.eq.s32.totalorder %s21, 0
      %p63 = por %p61, %p62
      %p64 = scmp.ne.s32.totalorder %s52, %s53
      %p65 = scmp.eq.s32.totalorder %s22, 1
      %p66 = por %p64, %p65
      %p68 = scmp.ne.s32.totalorder %s53, %s67
      %p69 = scmp.eq.s32.totalorder %s22, 0
      %p70 = por %p68, %p69
      %s72 = sadd.s32 %s71, 1
      %p75 = scmp.eq.s32.totalorder %s16, 1
      %p76 = scmp.ne.s32.totalorder %s71, %s73
      %p77 = scmp.eq.s32.totalorder %s16, 0
      %p78 = por %p76, %p77
      %p79 = scmp.ne.s32.totalorder %s71, %s73
      %p80 = scmp.eq.s32.totalorder %s21, 1
      %p81 = por %p79, %p80
      %p82 = scmp.ne.s32.totalorder %s73, %s74
      %p83 = scmp.eq.s32.totalorder %s21, 0
      %p84 = por %p82, %p83
      %p85 = scmp.ne.s32.totalorder %s73, %s74
      %p86 = scmp.eq.s32.totalorder %s22, 1
      %p87 = por %p85, %p86
      %p89 = scmp.ne.s32.totalorder %s74, %s88
      %p90 = scmp.eq.s32.totalorder %s22, 0
      %p91 = por %p89, %p90
      %s92 = ssub.s32 %s16, %s23
      %p93 = scmp.eq.s32.totalorder %s92, 0
      %s95 = sadd.s32 %s94, 1
      %s96 = scalar_select %p93, %s94, %s95
      %p99 = pneg %p93
      %p100 = scmp.eq.s32.totalorder %s16, 1
      %p101 = por %p99, %p100
      %p102 = scmp.ne.s32.totalorder %s94, %s97
      %p103 = scmp.eq.s32.totalorder %s16, 0
      %p104 = por %p102, %p103
      %p105 = scmp.ne.s32.totalorder %s94, %s97
      %p106 = scmp.eq.s32.totalorder %s21, 1
      %p107 = por %p105, %p106
      %p108 = scmp.ne.s32.totalorder %s97, %s98
      %p109 = scmp.eq.s32.totalorder %s21, 0
      %p110 = por %p108, %p109
      %p111 = scmp.ne.s32.totalorder %s97, %s98
      %p112 = scmp.eq.s32.totalorder %s22, 1
      %p113 = por %p111, %p112
      %p115 = scmp.ne.s32.totalorder %s98, %s114
      %p116 = scmp.eq.s32.totalorder %s22, 0
      %p117 = por %p115, %p116
      %p118 = scmp.le.s32.totalorder 1, %s16
      %p119 = scmp.lt.s32.totalorder %s16, 3
      %p120 = pnand %p118, %p119
      %p121 = pneg %p120
      // Predicated region
      $region9: #{tpu_custom_call.1} parent=5 // pred_check
        _
      $region10: #{tpu_custom_call.1} parent=5 // pred_check_branch
        %123 = sbr.rel (%p120) target = $region12
      $region11: #{tpu_custom_call.1} parent=5 // pred_region
        %s124 = ssub.s32 %s16, 1
        // Predicated region
        $region13: #{tpu_custom_call.1} parent=11 // pred_check
          %p125 = pneg %p63
        $region14: #{tpu_custom_call.1} parent=11 // pred_check_branch
          %127 = sbr.rel (%p125) target = $region16
        $region15: #{tpu_custom_call.1} parent=11 // pred_region
          %s129 = ssub.s32 1024, 1024
          %130 = vsyncadd [#allocation6], %s129
          %s131 = sshll.u32 [#allocation5], 4
          %s132 = int_to_ptr.vmem [resolvable:$true] %s131
          %137 = dma.hbm_to_vmem [thread:$0]  %s1, 1024, %s132, [#allocation6], 128, 128, 8
        $region16: #{tpu_custom_call.1} parent=11 // pred_fallthru
          _
        // Predicated region
        $region17: #{tpu_custom_call.1} parent=11 // pred_check
          %p138 = pneg %p84
        $region18: #{tpu_custom_call.1} parent=11 // pred_check_branch
          %140 = sbr.rel (%p138) target = $region20
        $region19: #{tpu_custom_call.1} parent=11 // pred_region
          _
        $region20: #{tpu_custom_call.1} parent=11 // pred_fallthru
          _
      $region12: #{tpu_custom_call.1} parent=5 // pred_fallthru
        _
      %p141 = scmp.lt.s32.totalorder %s16, 2
      // Predicated region
      $region21: #{tpu_custom_call.1} parent=5 // pred_check
        %p142 = pneg %p141
      $region22: #{tpu_custom_call.1} parent=5 // pred_check_branch
        %144 = sbr.rel (%p142) target = $region24
      $region23: #{tpu_custom_call.1} parent=5 // pred_region
        // Predicated region
        $region25: #{tpu_custom_call.1} parent=23 // pred_check
          %p145 = pneg %p36
        $region26: #{tpu_custom_call.1} parent=23 // pred_check_branch
          %147 = sbr.rel (%p145) target = $region28
        $region27: #{tpu_custom_call.1} parent=23 // pred_region
          %s148 = sand.u32 %s26, 1
          %s149 = scalar_lea.sflag [#allocation3], %s148
          %s150 = sand.u32 %s26, 1
          %s151 = scalar_lea.vmem [#allocation2], %s150
          %s153 = ssub.s32 16, 16
          %154 = vsyncadd %s149, %s153
          %s155 = smul.addr %s16, 16
          %s156 = scalar_lea.hbm %s0, %s155
          %s158 = sshll.u32 %s151, 4
          %s159 = int_to_ptr.vmem [resolvable:$true] %s158
          %161 = dma.hbm_to_vmem [thread:$0]  %s156, 16, %s159, %s149
        $region28: #{tpu_custom_call.1} parent=23 // pred_fallthru
          _
      $region24: #{tpu_custom_call.1} parent=5 // pred_fallthru
        _
      %p162 = scmp.le.s32.totalorder 1, %s16
      %p163 = scmp.lt.s32.totalorder %s16, 3
      %p164 = pnand %p162, %p163
      %p165 = pneg %p164
      // Predicated region
      $region29: #{tpu_custom_call.1} parent=5 // pred_check
        _
      $region30: #{tpu_custom_call.1} parent=5 // pred_check_branch
        %167 = sbr.rel (%p164) target = $region32
      $region31: #{tpu_custom_call.1} parent=5 // pred_region
        %s168 = ssub.s32 %s16, 1
        %s169 = sand.u32 %s29, 1
        %s170 = scalar_lea.sflag [#allocation3], %s169
        %s171 = sand.u32 %s29, 1
        %s172 = scalar_lea.vmem [#allocation2], %s171
        // Predicated region
        $region33: #{tpu_custom_call.1} parent=31 // pred_check
          %p173 = pneg %p42
        $region34: #{tpu_custom_call.1} parent=31 // pred_check_branch
          %175 = sbr.rel (%p173) target = $region36
        $region35: #{tpu_custom_call.1} parent=31 // pred_region
          %176 = dma.done %s170, 16
        $region36: #{tpu_custom_call.1} parent=31 // pred_fallthru
          _
        // Predicated region
        $region37: #{tpu_custom_call.1} parent=31 // pred_check
          %p177 = pneg %p63
        $region38: #{tpu_custom_call.1} parent=31 // pred_check_branch
          %179 = sbr.rel (%p177) target = $region40
        $region39: #{tpu_custom_call.1} parent=31 // pred_region
          %180 = dma.done [#allocation6], 1024
        $region40: #{tpu_custom_call.1} parent=31 // pred_fallthru
          _
        %s181 = sand.u32 %s29, 1
        %s182 = scalar_lea.sflag [#allocation3], %s181
        %s183 = sand.u32 %s29, 1
        %s184 = scalar_lea.vmem [#allocation2], %s183
        %p185 = pneg %p42
        %p186 = pneg %p39
        %p187 = pneg %p63
        %p188 = pneg %p60
        %p189 = pneg %p84
        %p190 = pneg %p81
        %p191 = pneg %p110
        %p192 = pneg %p107
        %s193 = sand.u32 %s97, 1
        %s194 = scalar_lea.sflag [#allocation4], %s193
        %s195 = sand.u32 %s97, 1
        %s196 = scalar_lea.vmem [#allocation7], %s195
        %v197 = vld [vmem:[%s172] sm:$0x1]
        %v198 = vld [vmem:[#allocation5] sm:$0xff]
        %v199 = vld [vmem:[#allocation5 + $0x8] sm:$0xff]
        %v200 = vld [vmem:[#allocation5 + $0x10] sm:$0xff]
        %v201 = vld [vmem:[#allocation5 + $0x18] sm:$0xff]
        %v202 = vld [vmem:[#allocation5 + $0x20] sm:$0xff]
        %v203 = vld [vmem:[#allocation5 + $0x28] sm:$0xff]
        %v204 = vld [vmem:[#allocation5 + $0x30] sm:$0xff]
        %v205 = vld [vmem:[#allocation5 + $0x38] sm:$0xff]
        %v206 = vld [vmem:[%s2] sm:$0x1]
        %vm207 = vcmask 523264
        %v209 = vsel %vm207, %v197, 0
        %211 = vmatprep.subr.mxu0 0.0
        %212 = vmatpush1.msra.mxu0 0.0
        %213 = vmatprep.subr.mxu0 0.0
        %214 = vmatpush1.msra.mxu0 0.0
        %215 = vmatprep.subr.mxu0 0.0
        %216 = vmatpush1.msra.mxu0 0.0
        %217 = vmatprep.subr.mxu0 0.0
        %218 = vmatpush1.msra.mxu0 0.0
        %219 = vmatprep.subr.mxu0 0.0
        %220 = vmatpush1.msra.mxu0 0.0
        %221 = vmatprep.subr.mxu0 0.0
        %222 = vmatpush1.msra.mxu0 0.0
        %223 = vmatprep.subr.mxu0 0.0
        %224 = vmatpush1.msra.mxu0 0.0
        %225 = vmatprep.subr.mxu0 0.0
        %226 = vmatpush1.msra.mxu0 0.0
        %227 = vmatprep.subr.mxu0 0.0
        %228 = vmatpush1.msra.mxu0 %v205
        %229 = vmatprep.subr.mxu0 0.0
        %230 = vmatpush1.msra.mxu0 %v204
        %231 = vmatprep.subr.mxu0 0.0
        %232 = vmatpush1.msra.mxu0 %v203
        %233 = vmatprep.subr.mxu0 0.0
        %234 = vmatpush1.msra.mxu0 %v202
        %235 = vmatprep.subr.mxu0 0.0
        %236 = vmatpush1.msra.mxu0 %v201
        %237 = vmatprep.subr.mxu0 0.0
        %238 = vmatpush1.msra.mxu0 %v200
        %239 = vmatprep.subr.mxu0 0.0
        %240 = vmatpush1.msra.mxu0 %v199
        %241 = vmatprep.subr.mxu0 0.0
        %242 = vmatpush1.msra.mxu0 %v198
        %243 = vmatprep.subr.mxu0 0.0
        %244 = vmatpush2.msra.mxu0 0.0
        %245 = vmatprep.subr.mxu0 0.0
        %246 = vmatpush2.msra.mxu0 0.0
        %247 = vmatprep.subr.mxu0 0.0
        %248 = vmatpush2.msra.mxu0 0.0
        %249 = vmatprep.subr.mxu0 0.0
        %250 = vmatpush2.msra.mxu0 0.0
        %251 = vmatprep.subr.mxu0 0.0
        %252 = vmatpush2.msra.mxu0 0.0
        %253 = vmatprep.subr.mxu0 0.0
        %254 = vmatpush2.msra.mxu0 0.0
        %255 = vmatprep.subr.mxu0 0.0
        %256 = vmatpush2.msra.mxu0 0.0
        %257 = vmatprep.subr.mxu0 0.0
        %258 = vmatpush2.msra.mxu0 0.0
        %259 = vmatprep.subr.mxu0 0.0
        %260 = vmatpush2.msra.mxu0 0.0
        %261 = vmatprep.subr.mxu0 0.0
        %262 = vmatpush2.msra.mxu0 0.0
        %263 = vmatprep.subr.mxu0 0.0
        %264 = vmatpush2.msra.mxu0 0.0
        %265 = vmatprep.subr.mxu0 0.0
        %266 = vmatpush2.msra.mxu0 0.0
        %267 = vmatprep.subr.mxu0 0.0
        %268 = vmatpush2.msra.mxu0 0.0
        %269 = vmatprep.subr.mxu0 0.0
        %270 = vmatpush2.msra.mxu0 0.0
        %271 = vmatprep.subr.mxu0 0.0
        %272 = vmatpush2.msra.mxu0 0.0
        %273 = vmatprep.subr.mxu0 0.0
        %274 = vmatpush2.msra.mxu0 0.0
        %275 = vmatprep.mubr.f32.mxu0 0.0
        %276 = vmatmul.mubr.f32.gmra.mxu0 %v209
        %v277 = vpop.f32.mrf.mxu0
        %v278 = vadd.f32 %v206, %v277
        %v279 = vpop.f32.mrf.mxu0
        %280 = vdwg.mxu0
        %vm281 = vcmask 516096
        %282 = vst.msk [vmem:[%s196] sm:$0x1] %vm281, %v278
        %s283 = sand.u32 %s97, 1
        %s284 = scalar_lea.sflag [#allocation4], %s283
        %s285 = sand.u32 %s97, 1
        %s286 = scalar_lea.vmem [#allocation7], %s285
        // Predicated region
        $region41: #{tpu_custom_call.1} parent=31 // pred_check
          %p287 = pneg %p107
        $region42: #{tpu_custom_call.1} parent=31 // pred_check_branch
          %289 = sbr.rel (%p287) target = $region44
        $region43: #{tpu_custom_call.1} parent=31 // pred_region
          %s291 = ssub.s32 16, 16
          %292 = vsyncadd %s284, %s291
          %s293 = smul.addr %s21, 16
          %s294 = scalar_lea.hbm %s3, %s293
          %s296 = sshll.u32 %s286, 4
          %s297 = int_to_ptr.vmem [resolvable:$true] %s296
          %299 = dma.vmem_to_hbm [thread:$0]  %s297, 16, %s294, %s284
        $region44: #{tpu_custom_call.1} parent=31 // pred_fallthru
          _
      $region32: #{tpu_custom_call.1} parent=5 // pred_fallthru
        _
      %p300 = scmp.le.s32.totalorder 2, %s16
      // Predicated region
      $region45: #{tpu_custom_call.1} parent=5 // pred_check
        %p301 = pneg %p300
      $region46: #{tpu_custom_call.1} parent=5 // pred_check_branch
        %303 = sbr.rel (%p301) target = $region48
      $region47: #{tpu_custom_call.1} parent=5 // pred_region
        %s304 = ssub.s32 %s16, 2
        // Predicated region
        $region49: #{tpu_custom_call.1} parent=47 // pred_check
          %p305 = pneg %p113
        $region50: #{tpu_custom_call.1} parent=47 // pred_check_branch
          %307 = sbr.rel (%p305) target = $region52
        $region51: #{tpu_custom_call.1} parent=47 // pred_region
          %s308 = sand.u32 %s98, 1
          %s309 = scalar_lea.sflag [#allocation4], %s308
          %s310 = sand.u32 %s98, 1
          %s311 = scalar_lea.vmem [#allocation7], %s310
          %312 = dma.done %s309, 16
        $region52: #{tpu_custom_call.1} parent=47 // pred_fallthru
          _
      $region48: #{tpu_custom_call.1} parent=5 // pred_fallthru
        _
    $region6: #{tpu_custom_call.1} parent=1 // loop_footer
      %s20 = sadd.s32 1, %s16
    $region7: #{tpu_custom_call.1} parent=1 // loop_footer_branch
      %15 = sbr.rel target = $region3
    $region8: #{tpu_custom_call.1} parent=1 // loop_exit
      _
    %313 = vsyncpa [#allocation3], 1
    %s314 = scalar_lea.sflag [#allocation3], 1
    %315 = vsyncpa %s314, 1
    %316 = vsyncpa [#allocation6], 1
    %317 = vsyncpa [#allocation4], 1
    %s318 = scalar_lea.sflag [#allocation4], 1
    %319 = vsyncpa %s318, 1

</llo_original>
